<compile_context>
chip_gen: v5e
topology: v5e:2x2
jax: 0.10.0
libtpu: 0.0.40
codegen_flags: <defaults>
</compile_context>

<pallas_src>
import functools
import math

import jax
import jax.numpy as jnp
from jax import lax
from jax.experimental import pallas as pl
from jax.experimental.pallas import tpu as pltpu


def _fixnorm_kernel(inv_wscale_ref, w_ref, x_ref, o_ref, *, eps):
    # inv_wscale_ref: SMEM scalar (1,)  == scale / max(||w||, eps)
    # w_ref:          (1, D) weight tile (full weight, broadcast over rows)
    # x_ref:          (block_rows, D) input tile
    x = x_ref[...].astype(jnp.float32)
    w = w_ref[...].astype(jnp.float32)                       # (1, D)
    inv_wscale = inv_wscale_ref[0]

    # clamp(||x||, eps) == sqrt(clamp(sum(x^2), eps^2)) -> single rsqrt (EUP)
    sumsq = jnp.sum(x * x, axis=-1, keepdims=True)           # (block_rows, 1)
    sumsq = jnp.maximum(sumsq, jnp.float32(eps) * jnp.float32(eps))
    inv_row = lax.rsqrt(sumsq)                               # 1 / clamp(||x||, eps)

    o_ref[...] = (x * w * (inv_wscale * inv_row)).astype(o_ref.dtype)


def _choose_block_rows(n_rows, d, x_itemsize, out_itemsize,
                       vmem_budget_bytes=24 << 20, max_rows=4096):
    """Largest row-tile whose double-buffered in+out footprint fits the budget."""
    d_pad = ((d + 127) // 128) * 128                 # VMEM lanes pad to 128
    bytes_per_row = 2 * d_pad * (x_itemsize + out_itemsize)  # 2 = double-buffer
    cap = vmem_budget_bytes // max(bytes_per_row, 1)
    cap = min(int(cap), max_rows)
    cap = max((cap // 8) * 8, 8)                     # sublane multiple of 8
    if n_rows <= cap:
        return n_rows                                # single full-extent block
    return cap                                       # ragged last block handled by cdiv grid


def fixnorm(x, weight, scale, *, eps=1e-5, block_rows=None):
    """Pallas FixNorm. x: (..., D), weight: (D,), scale: scalar."""
    orig_shape = x.shape
    D = orig_shape[-1]
    n_rows = 1
    for s in orig_shape[:-1]:
        n_rows *= int(s)
    n_rows = max(n_rows, 1)
    x2 = x.reshape(n_rows, D)

    if block_rows is None:
        block_rows = _choose_block_rows(
            n_rows, D, x2.dtype.itemsize, x2.dtype.itemsize)
    block_rows = min(block_rows, n_rows) if n_rows >= 8 else n_rows
    grid = (pl.cdiv(n_rows, block_rows),)

    # Hoist the grid-invariant weight norm: one tiny O(D) reduction in JAX.
    w_f32 = weight.astype(jnp.float32)
    w_norm = jnp.maximum(jnp.sqrt(jnp.sum(w_f32 * w_f32)), jnp.float32(eps))
    inv_wscale = (jnp.asarray(scale, jnp.float32) / w_norm).reshape(1)

    w2 = weight.reshape(1, D)   # keep HBM dtype; upcast inside kernel

    out = pl.pallas_call(
        functools.partial(_fixnorm_kernel, eps=float(eps)),
        out_shape=jax.ShapeDtypeStruct((n_rows, D), x.dtype),
        grid_spec=pltpu.PrefetchScalarGridSpec(
            num_scalar_prefetch=0,
            grid=grid,
            in_specs=[
                pl.BlockSpec(memory_space=pltpu.MemorySpace.SMEM),   # inv_wscale
                pl.BlockSpec((1, D), lambda i: (0, 0)),              # weight
                pl.BlockSpec((block_rows, D), lambda i: (i, 0)),     # x tile
            ],
            out_specs=pl.BlockSpec((block_rows, D), lambda i: (i, 0)),
        ),
        compiler_params=pltpu.CompilerParams(
            dimension_semantics=("parallel",),       # lets megacore/v7x split the grid
            vmem_limit_bytes=32 * 1024 * 1024,       # safe on v5e/v6e/v7x for 24 MiB tiles
        ),
    )(inv_wscale, w2, x2)

    return out.reshape(orig_shape)


def fixnorm_ref(x, weight, scale, eps=1e-5):
    """Pure-JAX reference mirroring the PyTorch forward."""
    xn = jnp.maximum(jnp.linalg.norm(x, axis=-1, keepdims=True), eps)
    wn = jnp.maximum(jnp.linalg.norm(weight), eps)
    norm = scale / (xn * wn)
    return x * weight * norm


if __name__ == "__main__":
    key = jax.random.PRNGKey(0)
    k_x, k_w, k_x2 = jax.random.split(key, 3)

    batch, seq, hidden = 2, 8, 32            # x: (2, 8, 32), reduce over hidden
    x = jax.random.normal(k_x, (batch, seq, hidden), dtype=jnp.float32)

    # deterministic parameter init matching the module's __init__ shapes
    weight = jax.random.normal(k_w, (hidden,), dtype=jnp.float32)  # ~ torch.randn(input_dim)
    scale = jnp.float32(math.sqrt(hidden * 1.0))                   # sqrt(dim)

    out = fixnorm(x, weight, scale, eps=1e-5)
    jax.block_until_ready(out)
    ref = fixnorm_ref(x, weight, scale, eps=1e-5)
    assert out.shape == x.shape
    assert jnp.allclose(out, ref, atol=2e-5, rtol=2e-5), "mismatch vs reference"

    # ragged-grid path: row count (15) not a multiple of the tile (8)
    x_odd = jax.random.normal(k_x2, (3, 5, hidden), dtype=jnp.float32)
    out_odd = fixnorm(x_odd, weight, scale, eps=1e-5, block_rows=8)
    jax.block_until_ready(out_odd)
    ref_odd = fixnorm_ref(x_odd, weight, scale, eps=1e-5)
    assert jnp.allclose(out_odd, ref_odd, atol=2e-5, rtol=2e-5), "ragged mismatch"

    print("KERNEL_OK")
</pallas_src>

<mosaic_0001>
module attributes {stable_mosaic.version = 11 : i64} {
  func.func @_fixnorm_kernel(%arg0: i32, %arg1: memref<1xf32, #tpu.memory_space<smem>>, %arg2: memref<1x32xf32, #tpu.memory_space<vmem>>, %arg3: memref<16x32xf32, #tpu.memory_space<vmem>>, %arg4: memref<16x32xf32, #tpu.memory_space<vmem>>) attributes {dimension_semantics = [#tpu.dimension_semantics<parallel>], iteration_bounds = array<i64: 1>, scalar_prefetch = 0 : i64, scratch_operands = 0 : i64, tpu.core_type = #tpu.core_type<tc>, window_params = [{transform_indices = @transform_0, window_bounds = array<i64: 1>}, {pipeline_mode = #tpu.pipeline_mode<synchronous>, transform_indices = @transform_1, window_bounds = array<i64: 1, 32>}, {transform_indices = @transform_2, window_bounds = array<i64: 16, 32>}, {transform_indices = @transform_3, window_bounds = array<i64: 16, 32>}]} {
    %c0 = arith.constant 0 : index
    %c0_0 = arith.constant 0 : index
    %0 = vector.load %arg3[%c0, %c0_0] : memref<16x32xf32, #tpu.memory_space<vmem>>, vector<16x32xf32>
    %c0_1 = arith.constant 0 : index
    %c0_2 = arith.constant 0 : index
    %1 = vector.load %arg2[%c0_1, %c0_2] : memref<1x32xf32, #tpu.memory_space<vmem>>, vector<1x32xf32>
    %c0_3 = arith.constant 0 : index
    %2 = memref.load %arg1[%c0_3] : memref<1xf32, #tpu.memory_space<smem>>
    %3 = arith.mulf %0, %0 : vector<16x32xf32>
    %cst = arith.constant dense<0.000000e+00> : vector<16xf32>
    %4 = vector.multi_reduction <add>, %3, %cst [1] : vector<16x32xf32> to vector<16xf32>
    %5 = vector.shape_cast %4 : vector<16xf32> to vector<16x1xf32>
    %cst_4 = arith.constant 9.99999974E-6 : f32
    %cst_5 = arith.constant 9.99999974E-6 : f32
    %6 = arith.mulf %cst_4, %cst_5 : f32
    %7 = vector.broadcast %6 : f32 to vector<16x1xf32>
    %8 = arith.maximumf %5, %7 : vector<16x1xf32>
    %9 = math.rsqrt %8 : vector<16x1xf32>
    %10 = vector.broadcast %1 : vector<1x32xf32> to vector<16x32xf32>
    %11 = arith.mulf %0, %10 : vector<16x32xf32>
    %12 = vector.broadcast %2 : f32 to vector<16x1xf32>
    %13 = arith.mulf %12, %9 : vector<16x1xf32>
    %14 = vector.broadcast %13 : vector<16x1xf32> to vector<16x32xf32>
    %15 = arith.mulf %11, %14 : vector<16x32xf32>
    %c0_6 = arith.constant 0 : index
    %c0_7 = arith.constant 0 : index
    %16 = vector.load %arg4[%c0_6, %c0_7] : memref<16x32xf32, #tpu.memory_space<vmem>>, vector<16x32xf32>
    tpu.vector_store %arg4[%c0_6, %c0_7], %15 {strides = array<i32>} : memref<16x32xf32, #tpu.memory_space<vmem>>, vector<16x32xf32>,
    return
  }
  func.func @transform_0(%arg0: i32) -> i32 {
    %c0_i32 = arith.constant 0 : i32
    %c0_i32_0 = arith.constant 0 : i32
    return %c0_i32 : i32
  }
  func.func @transform_1(%arg0: i32) -> (i32, i32) {
    %c0_i32 = arith.constant 0 : i32
    %c0_i32_0 = arith.constant 0 : i32
    %c0_i32_1 = arith.constant 0 : i32
    return %c0_i32, %c0_i32_0 : i32, i32
  }
  func.func @transform_2(%arg0: i32) -> (i32, i32) {
    %c0_i32 = arith.constant 0 : i32
    %c0_i32_0 = arith.constant 0 : i32
    return %arg0, %c0_i32 : i32, i32
  }
  func.func @transform_3(%arg0: i32) -> (i32, i32) {
    %c0_i32 = arith.constant 0 : i32
    %c0_i32_0 = arith.constant 0 : i32
    return %arg0, %c0_i32 : i32, i32
  }
}

</mosaic_0001>

<llo_original>
// kernel: tpu_custom_call.1
$region0: #{tpu_custom_call.1}
  #allocation0 [shape = 'u32[]', space=smem, size = 0x4, offset = 0x4, fixed_abs, tag = 'smem constant byte address 0x4 - core index']
  #allocation1 [shape = 'u32[72,128]{1,0:T(1,128)}', space=vmem, size = 0x9000, scoped, tag = 'internal scratch']
  #allocation2 [shape = 'f32[1]{0:T(128)S(6)}', space=smem, size = 0x200, scoped, tag = 'scoped memory for tpu_custom_call.1']
  %s0 = inlined_call_operand.<no memory space> [shape: f32[1], index: 0, kind: input, shape index: {}]
  %s1 = inlined_call_operand.vmem [shape: f32[1,32], index: 1, kind: input, shape index: {}]
  %s2 = inlined_call_operand.hbm [shape: f32[16,32], index: 2, kind: input, shape index: {}]
  %s3 = inlined_call_operand.hbm [shape: f32[16,32], index: 3, kind: output, shape index: {}]
  %s4 = sld [smem:[#allocation0]]
  $region26: #{tpu_custom_call.1} parent=0
    _
  %s6 = ssub.s32 1, %s4
  %s7 = scalar_select 0, %s6, %s4
  %8 = sst [smem:[#allocation2]] %s0
  $region1: #{tpu_custom_call.1} parent=0
    #allocation3 [shape = 'u8[8192]{0}', space=vmem, size = 0x2000, scoped, tag = 'input window, operand 2, single buffered']
    #allocation4 [shape = 's32[1]{0}', space=sflag, size = 0x4, scoped, tag = 'scoped memory for tpu_custom_call.1']
    #allocation5 [shape = 's32[1]{0}', space=sflag, size = 0x4, scoped, tag = 'scoped memory for tpu_custom_call.1']
    #allocation6 [shape = 'u8[8192]{0}', space=vmem, size = 0x2000, scoped, tag = 'output window, operand 0, single buffered']
    %9 = vsyncpa [#allocation4], 0
    %10 = vsyncpa [#allocation5], 0
    // Predicated region
    $region2: #{tpu_custom_call.1} parent=1 // pred_check
      _
    $region3: #{tpu_custom_call.1} parent=1 // pred_check_branch
      %12 = sbr.rel (0) target = $region5
    $region4: #{tpu_custom_call.1} parent=1 // pred_region
      _
    $region5: #{tpu_custom_call.1} parent=1 // pred_fallthru
      _
    // Predicated region
    $region6: #{tpu_custom_call.1} parent=1 // pred_check
      _
    $region7: #{tpu_custom_call.1} parent=1 // pred_check_branch
      %14 = sbr.rel (0) target = $region9
    $region8: #{tpu_custom_call.1} parent=1 // pred_region
      _
    $region9: #{tpu_custom_call.1} parent=1 // pred_fallthru
      _
    // Predicated region
    $region10: #{tpu_custom_call.1} parent=1 // pred_check
      _
    $region11: #{tpu_custom_call.1} parent=1 // pred_check_branch
      %16 = sbr.rel (0) target = $region13
    $region12: #{tpu_custom_call.1} parent=1 // pred_region
      %18 = vsyncadd [#allocation4], 0
      %s19 = sshll.u32 %s2, 4
      %s20 = int_to_ptr.hbm [resolvable:$true] %s19
      %s21 = sshll.u32 [#allocation3], 4
      %s22 = int_to_ptr.vmem [resolvable:$true] %s21
      %27 = dma.hbm_to_vmem [thread:$0]  %s20, 256, %s22, [#allocation4], 128, 128, 8
    $region13: #{tpu_custom_call.1} parent=1 // pred_fallthru
      _
    // Predicated region
    $region14: #{tpu_custom_call.1} parent=1 // pred_check
      _
    $region15: #{tpu_custom_call.1} parent=1 // pred_check_branch
      %29 = sbr.rel (0) target = $region17
    $region16: #{tpu_custom_call.1} parent=1 // pred_region
      %31 = dma.done [#allocation4], 256
    $region17: #{tpu_custom_call.1} parent=1 // pred_fallthru
      _
    %v32 = vld [vmem:[#allocation3] sm:$0xff]
    %v33 = vld [vmem:[#allocation3 + $0x8] sm:$0xff]
    %v34 = vld [vmem:[%s1] sm:$0x1]
    %s35 = sld [smem:[#allocation2]]
    %v36 = vmul.f32 %v32, %v32
    %v37 = vmul.f32 %v33, %v33
    %vm38 = vcmask 261120
    %v39 = vsel %vm38, %v36, 0.0
    %40 = vadd.xlane.f32.xlu0 %v39
    %v41 = vpop.xlane.xlu0 %40
    %v42 = vsel %vm38, %v37, 0.0
    %43 = vadd.xlane.f32.xlu0 %v42
    %v44 = vpop.xlane.xlu0 %43
    %v45 = vmax.f32 %v41, 9.9999994e-11
    %v46 = vmax.f32 %v44, 9.9999994e-11
    %v47 = vrsqrt.pop %v45
    %v48 = vmul.f32 %v47, %v45
    %v49 = vmul.f32 %v48, %v47
    %v50 = vmul.f32 0.5, %v49
    %v51 = vsub.f32 1.5, %v50
    %v52 = vmul.f32 %v47, %v51
    %vm53 = vweird.f32 %v45
    %vm54 = vweird.f32 %v47
    %vm55 = vmor %vm53, %vm54
    %v56 = vsel %vm55, %v47, %v52
    %v57 = vrsqrt.pop %v46
    %v58 = vmul.f32 %v57, %v46
    %v59 = vmul.f32 %v58, %v57
    %v60 = vmul.f32 0.5, %v59
    %v61 = vsub.f32 1.5, %v60
    %v62 = vmul.f32 %v57, %v61
    %vm63 = vweird.f32 %v46
    %vm64 = vweird.f32 %v57
    %vm65 = vmor %vm63, %vm64
    %v66 = vsel %vm65, %v57, %v62
    %v68 = vperm.slane %v34, 0
    %v70 = vmul.f32 %v32, %v68
    %v71 = vmul.f32 %v33, %v68
    %v72 = vstv %s35
    %v73 = vmul.f32 %v72, %v56
    %v74 = vmul.f32 %v72, %v66
    %v75 = vmul.f32 %v70, %v73
    %v76 = vmul.f32 %v71, %v74
    %77 = vst.msk [vmem:[#allocation6] sm:$0xff] %vm38, %v75
    %78 = vst.msk [vmem:[#allocation6 + $0x8] sm:$0xff] %vm38, %v76
    // Predicated region
    $region18: #{tpu_custom_call.1} parent=1 // pred_check
      _
    $region19: #{tpu_custom_call.1} parent=1 // pred_check_branch
      %80 = sbr.rel (0) target = $region21
    $region20: #{tpu_custom_call.1} parent=1 // pred_region
      %82 = vsyncadd [#allocation5], 0
      %s83 = sshll.u32 [#allocation6], 4
      %s84 = int_to_ptr.vmem [resolvable:$true] %s83
      %s85 = sshll.u32 %s3, 4
      %s86 = int_to_ptr.hbm [resolvable:$true] %s85
      %91 = dma.vmem_to_hbm [thread:$0]  %s84, 256, %s86, [#allocation5], 128, 128, 8
    $region21: #{tpu_custom_call.1} parent=1 // pred_fallthru
      _
    // Predicated region
    $region22: #{tpu_custom_call.1} parent=1 // pred_check
      _
    $region23: #{tpu_custom_call.1} parent=1 // pred_check_branch
      %93 = sbr.rel (0) target = $region25
    $region24: #{tpu_custom_call.1} parent=1 // pred_region
      %95 = dma.done [#allocation5], 256
    $region25: #{tpu_custom_call.1} parent=1 // pred_fallthru
      _
    %96 = vsyncpa [#allocation4], 1
    %97 = vsyncpa [#allocation5], 1

</llo_original>
